<compile_context>
chip_gen: v6e
topology: v6e:2x2x1
jax: 0.10.0
libtpu: 0.0.40
codegen_flags: <defaults>
</compile_context>

<pallas_src>
import functools

import jax
import jax.numpy as jnp
import numpy as np
from jax import lax
from jax.experimental import pallas as pl
from jax.experimental.pallas import tpu as pltpu


# --------------------------------------------------------------------------
# Helpers
# --------------------------------------------------------------------------

def _round_up(x, m):
    return (x + m - 1) // m * m


def _vmem_capacity_bytes():
    """Per-core VMEM capacity; falls back to the smallest (v7x) if unknown."""
    try:
        cap = int(pltpu.get_tpu_info().vmem_capacity_bytes)
        if cap > 0:
            return cap
    except Exception:
        pass
    return 64 * 1024 * 1024


def _vmem_limit(n_bytes, vmem_cap):
    """Scoped-VMEM budget sized to the live buffers, capped below physical."""
    headroom = 4 * 1024 * 1024           # Mosaic-internal scratch etc.
    ceiling = max(vmem_cap - 4 * 1024 * 1024, 32 * 1024 * 1024)
    return int(min(max(n_bytes + headroom, 32 * 1024 * 1024), ceiling))


def _pick_tile_n(n_padded, cap):
    """Largest multiple of 128 that divides n_padded and is <= cap."""
    best = 128
    for d in range(128, cap + 1, 128):
        if n_padded % d == 0:
            best = d
    return best


# --------------------------------------------------------------------------
# Fused kernel: X resident in VMEM, energy+softmax once, output streamed.
# --------------------------------------------------------------------------

def _cam_fused_kernel(gamma_ref, x_ref, o_ref, attn_ref, *, tile_n, matmul_dtype):
    """grid = (B, n_tiles); x_ref is the full (C, Np) slab (resident across t).

    gamma_ref: (1,)  f32 in SMEM.
    x_ref:     (C, Np) f32, block index constant over t -> stays in VMEM.
    o_ref:     (C, tile_n) f32 output tile.
    attn_ref:  (C, C) matmul_dtype VMEM scratch (attention, computed at t==0).
    """
    t = pl.program_id(1)

    @pl.when(t == 0)
    def _():
        # energy = X @ X^T (contraction over the spatial/lane dim).
        xm = x_ref[...].astype(matmul_dtype)
        energy = lax.dot_general(
            xm, xm,
            dimension_numbers=(((1,), (1,)), ((), ())),
            preferred_element_type=jnp.float32,
        )
        # softmax(rowmax(E) - E) stabilized == exp(rowmin(E) - E) / sum.
        e_min = jnp.min(energy, axis=-1, keepdims=True)
        p = jnp.exp(e_min - energy)
        denom = jnp.sum(p, axis=-1, keepdims=True)
        attn_ref[...] = (p * pl.reciprocal(denom, approx=True)).astype(attn_ref.dtype)

    off = pl.multiple_of(t * tile_n, 128)
    x_t = x_ref[:, pl.ds(off, tile_n)]                     # (C, tile_n) f32
    out = jnp.dot(attn_ref[...], x_t.astype(matmul_dtype),
                  preferred_element_type=jnp.float32)
    o_ref[...] = gamma_ref[0] * out + x_t                  # lane-dense store


# --------------------------------------------------------------------------
# Streamed fallback: pass 1 (energy + softmax), pass 2 (attn @ X + residual).
# --------------------------------------------------------------------------

def _cam_energy_softmax_kernel(x_ref, attn_ref, acc_ref, *, matmul_dtype):
    """Pass 1: accumulate energy over N tiles in f32 scratch; softmax at last.

    x_ref:    (C, tn) f32 tile of the flattened feature map.
    attn_ref: (C, C)  matmul_dtype output (written only at the last tile).
    acc_ref:  (C, C)  f32 VMEM scratch accumulator.
    """
    t = pl.program_id(1)

    @pl.when(t == 0)
    def _():
        acc_ref[...] = jnp.zeros_like(acc_ref)

    xm = x_ref[...].astype(matmul_dtype)            # cast only at the dot boundary
    acc_ref[...] += lax.dot_general(
        xm, xm,
        dimension_numbers=(((1,), (1,)), ((), ())),
        preferred_element_type=jnp.float32,
    )

    @pl.when(t == pl.num_programs(1) - 1)
    def _():
        energy = acc_ref[...]
        e_min = jnp.min(energy, axis=-1, keepdims=True)
        p = jnp.exp(e_min - energy)
        denom = jnp.sum(p, axis=-1, keepdims=True)
        attn_ref[...] = (p * pl.reciprocal(denom, approx=True)).astype(attn_ref.dtype)


def _cam_out_kernel(gamma_ref, attn_ref, x_ref, o_ref):
    """Pass 2: out_tile = gamma * (attn @ x_tile) + x_tile (residual in f32)."""
    x = x_ref[...]                                  # (C, tn) f32
    out = jnp.dot(attn_ref[...], x.astype(attn_ref.dtype),
                  preferred_element_type=jnp.float32)
    o_ref[...] = gamma_ref[0] * out + x             # full-block, lane-dense store


# --------------------------------------------------------------------------
# Wrapper
# --------------------------------------------------------------------------

def cam_module_forward(x, gamma, *, matmul_dtype=jnp.bfloat16, tile_n=2048,
                       force_streamed=False):
    """CAM_Module.forward. x: (B, C, H, W) f32; gamma: (1,) f32 -> (B, C, H, W) f32."""
    assert tile_n >= 128 and tile_n % 128 == 0, "tile_n must be a multiple of 128"
    B, C, H, W = x.shape
    N = H * W

    mm_b = jnp.dtype(matmul_dtype).itemsize
    f32b = 4

    # ---- spatial padding / tile selection (minimize pad+slice HBM passes) --
    n_pad = _round_up(N, 128)
    tn = _pick_tile_n(n_pad, min(tile_n, n_pad))
    if tn < min(512, n_pad):
        # Awkward N (no decent 128-multiple divisor): accept a slightly larger
        # zero-pad so per-step work amortizes the ~0.35 us grid-step overhead.
        tn = min(tile_n, n_pad)
        n_pad = _round_up(N, tn)
    n_tiles = n_pad // tn

    x_flat = x.reshape(B, C, N)
    if n_pad != N:
        x_flat = jnp.pad(x_flat, ((0, 0), (0, 0), (0, n_pad - N)))

    vmem_cap = _vmem_capacity_bytes()

    # ---- fused-path VMEM estimate (gen-aware) ------------------------------
    slab_f32 = C * n_pad * f32b
    fused_bytes = (2 * slab_f32                 # resident X, double-buffered over b
                   + C * n_pad * mm_b           # one-shot cast of the slab (t == 0)
                   + 4 * C * tn * f32b          # streamed out tiles + per-tile temps
                   + C * tn * mm_b              # per-tile cast
                   + 4 * C * C * f32b           # energy / softmax f32 temps
                   + C * C * mm_b)              # attention scratch
    use_fused = (not force_streamed) and (fused_bytes + (8 << 20) <= vmem_cap)

    if use_fused:
        out_flat = pl.pallas_call(
            functools.partial(_cam_fused_kernel, tile_n=tn,
                              matmul_dtype=matmul_dtype),
            out_shape=jax.ShapeDtypeStruct((B, C, n_pad), jnp.float32),
            grid_spec=pltpu.PrefetchScalarGridSpec(
                num_scalar_prefetch=0,
                grid=(B, n_tiles),
                in_specs=[
                    pl.BlockSpec(memory_space=pltpu.SMEM),                       # gamma
                    pl.BlockSpec((pl.Squeezed(), C, n_pad),
                                 lambda b, t: (b, 0, 0)),                        # X resident
                ],
                out_specs=pl.BlockSpec((pl.Squeezed(), C, tn),
                                       lambda b, t: (b, 0, t)),
                scratch_shapes=[pltpu.VMEM((C, C), matmul_dtype)],
            ),
            compiler_params=pltpu.CompilerParams(
                dimension_semantics=("parallel", "arbitrary"),
                vmem_limit_bytes=_vmem_limit(fused_bytes, vmem_cap),
            ),
        )(gamma, x_flat)
    else:
        # ---- pass 1: attention = softmax(rowmax(E) - E), E = X @ X^T -------
        k1_bytes = (3 * C * tn * f32b + C * tn * mm_b
                    + 4 * C * C * f32b + 2 * C * C * mm_b)
        attn = pl.pallas_call(
            functools.partial(_cam_energy_softmax_kernel,
                              matmul_dtype=matmul_dtype),
            out_shape=jax.ShapeDtypeStruct((B, C, C), matmul_dtype),
            grid_spec=pltpu.PrefetchScalarGridSpec(
                num_scalar_prefetch=0,
                grid=(B, n_tiles),
                in_specs=[
                    pl.BlockSpec((pl.Squeezed(), C, tn), lambda b, t: (b, 0, t)),
                ],
                out_specs=pl.BlockSpec((pl.Squeezed(), C, C),
                                       lambda b, t: (b, 0, 0)),
                scratch_shapes=[pltpu.VMEM((C, C), jnp.float32)],
            ),
            compiler_params=pltpu.CompilerParams(
                dimension_semantics=("parallel", "arbitrary"),
                vmem_limit_bytes=_vmem_limit(k1_bytes, vmem_cap),
            ),
        )(x_flat)

        # ---- pass 2: out = gamma * (attn @ X) + X, streamed over N tiles ---
        k2_bytes = (5 * C * tn * f32b + C * tn * mm_b + 2 * C * C * mm_b
                    + 2 * C * tn * f32b)
        out_flat = pl.pallas_call(
            _cam_out_kernel,
            out_shape=jax.ShapeDtypeStruct((B, C, n_pad), jnp.float32),
            grid_spec=pltpu.PrefetchScalarGridSpec(
                num_scalar_prefetch=0,
                grid=(B, n_tiles),
                in_specs=[
                    pl.BlockSpec(memory_space=pltpu.SMEM),                         # gamma
                    pl.BlockSpec((pl.Squeezed(), C, C), lambda b, t: (b, 0, 0)),   # attn
                    pl.BlockSpec((pl.Squeezed(), C, tn), lambda b, t: (b, 0, t)),  # x
                ],
                out_specs=pl.BlockSpec((pl.Squeezed(), C, tn),
                                       lambda b, t: (b, 0, t)),
            ),
            compiler_params=pltpu.CompilerParams(
                dimension_semantics=("parallel", "parallel"),
                vmem_limit_bytes=_vmem_limit(k2_bytes, vmem_cap),
            ),
        )(gamma, attn, x_flat)

    if n_pad != N:
        out_flat = out_flat[:, :, :N]
    return out_flat.reshape(B, C, H, W)


# --------------------------------------------------------------------------
# Pure-JAX reference (CAM_Module.forward), optionally rounding dots to bf16.
# --------------------------------------------------------------------------

def _cam_reference(x, gamma, matmul_dtype=jnp.float32):
    B, C, H, W = x.shape
    q = x.reshape(B, C, -1)
    qm = q.astype(matmul_dtype)
    energy = jnp.einsum("bcn,bdn->bcd", qm, qm,
                        preferred_element_type=jnp.float32)
    energy_new = jnp.max(energy, axis=-1, keepdims=True) - energy
    attn = jax.nn.softmax(energy_new, axis=-1)
    out = jnp.einsum("bcd,bdn->bcn", attn.astype(matmul_dtype), qm,
                     preferred_element_type=jnp.float32)
    out = out.reshape(B, C, H, W)
    return gamma[0] * out + x


if __name__ == "__main__":
    key = jax.random.PRNGKey(0)
    B, C, H, W = 2, 4, 16, 16
    x = jax.random.normal(key, (B, C, H, W), dtype=jnp.float32)

    gamma0 = jnp.zeros((1,), dtype=jnp.float32)      # CAM_Module init: zeros(1)
    gamma = jnp.array([0.5], dtype=jnp.float32)      # exercise the attention path

    # ---- fused path, f32 matmul: close to the exact module -----------------
    out_f32 = jax.block_until_ready(
        cam_module_forward(x, gamma, matmul_dtype=jnp.float32))
    ref_f32 = _cam_reference(x, gamma, matmul_dtype=jnp.float32)
    np.testing.assert_allclose(np.asarray(out_f32), np.asarray(ref_f32),
                               rtol=5e-3, atol=5e-3)

    # ---- fused path, bf16 matmul (production default) ----------------------
    out_bf16 = jax.block_until_ready(
        cam_module_forward(x, gamma, matmul_dtype=jnp.bfloat16))
    ref_bf16 = _cam_reference(x, gamma, matmul_dtype=jnp.bfloat16)
    np.testing.assert_allclose(np.asarray(out_bf16), np.asarray(ref_bf16),
                               rtol=2e-2, atol=2e-2)

    # ---- streamed fallback path (forced), multi-tile reduction -------------
    out_s_f32 = jax.block_until_ready(
        cam_module_forward(x, gamma, matmul_dtype=jnp.float32,
                           tile_n=128, force_streamed=True))
    np.testing.assert_allclose(np.asarray(out_s_f32), np.asarray(ref_f32),
                               rtol=5e-3, atol=5e-3)
    out_s_bf16 = jax.block_until_ready(
        cam_module_forward(x, gamma, matmul_dtype=jnp.bfloat16,
                           tile_n=128, force_streamed=True))
    np.testing.assert_allclose(np.asarray(out_s_bf16), np.asarray(ref_bf16),
                               rtol=2e-2, atol=2e-2)

    # ---- ragged / unaligned shape (pads N to the 128-lane grid) ------------
    x_r = jax.random.normal(jax.random.PRNGKey(1), (1, 6, 10, 13),
                            dtype=jnp.float32)
    out_r = jax.block_until_ready(
        cam_module_forward(x_r, gamma, matmul_dtype=jnp.float32))
    ref_r = _cam_reference(x_r, gamma, matmul_dtype=jnp.float32)
    np.testing.assert_allclose(np.asarray(out_r), np.asarray(ref_r),
                               rtol=5e-3, atol=5e-3)

    # ---- gamma == 0 (module initialization): output equals the input -------
    out_g0 = jax.block_until_ready(cam_module_forward(x, gamma0))
    np.testing.assert_allclose(np.asarray(out_g0), np.asarray(x),
                               rtol=0.0, atol=1e-6)

    print("KERNEL_OK")
</pallas_src>

<mosaic_0001>
module attributes {stable_mosaic.version = 11 : i64} {
  func.func @_cam_fused_kernel(%arg0: i32, %arg1: i32, %arg2: memref<1xf32, #tpu.memory_space<smem>>, %arg3: memref<1x4x256xf32, #tpu.memory_space<vmem>>, %arg4: memref<1x4x256xf32, #tpu.memory_space<vmem>>, %arg5: memref<4x4xf32, #tpu.memory_space<vmem>>) attributes {dimension_semantics = [#tpu.dimension_semantics<parallel>, #tpu.dimension_semantics<arbitrary>], iteration_bounds = array<i64: 2, 1>, scalar_prefetch = 0 : i64, scratch_operands = 1 : i64, tpu.core_type = #tpu.core_type<tc>, window_params = [{transform_indices = @transform_0, window_bounds = array<i64: 1>}, {transform_indices = @transform_1, window_bounds = array<i64: 1, 4, 256>}, {transform_indices = @transform_2, window_bounds = array<i64: 1, 4, 256>}]} {
    %c0_i32 = arith.constant 0 : i32
    %0 = arith.cmpi eq, %arg1, %c0_i32 : i32
    %1 = arith.extui %0 : i1 to i32
    %c0_i32_0 = arith.constant 0 : i32
    %2 = arith.cmpi ne, %1, %c0_i32_0 : i32
    scf.if %2 {
      %c0_8 = arith.constant 0 : index
      %c0_9 = arith.constant 0 : index
      %c0_10 = arith.constant 0 : index
      %17 = vector.load %arg3[%c0_8, %c0_9, %c0_10] : memref<1x4x256xf32, #tpu.memory_space<vmem>>, vector<1x4x256xf32>
      %18 = vector.shape_cast %17 : vector<1x4x256xf32> to vector<4x256xf32>
      %cst_11 = arith.constant dense<0.000000e+00> : vector<4x4xf32>
      %19 = tpu.matmul %18, %18, %cst_11 {dimension_numbers = #tpu.dot_dimension_numbers<[1], [1], [0], [0], [0, 0, 1, 0], [], []>} : vector<4x256xf32>, vector<4x256xf32>, vector<4x4xf32> -> vector<4x4xf32>
      %cst_12 = arith.constant dense<0x7F800000> : vector<4xf32>
      %20 = vector.multi_reduction <minimumf>, %19, %cst_12 [1] : vector<4x4xf32> to vector<4xf32>
      %21 = vector.shape_cast %20 : vector<4xf32> to vector<4x1xf32>
      %22 = vector.broadcast %21 : vector<4x1xf32> to vector<4x4xf32>
      %23 = arith.subf %22, %19 : vector<4x4xf32>
      %24 = math.exp %23 : vector<4x4xf32>
      %cst_13 = arith.constant dense<0.000000e+00> : vector<4xf32>
      %25 = vector.multi_reduction <add>, %24, %cst_13 [1] : vector<4x4xf32> to vector<4xf32>
      %26 = vector.shape_cast %25 : vector<4xf32> to vector<4x1xf32>
      %27 = tpu.reciprocal %26 {approx = true} : vector<4x1xf32> -> vector<4x1xf32>
      %28 = vector.broadcast %27 : vector<4x1xf32> to vector<4x4xf32>
      %29 = arith.mulf %24, %28 : vector<4x4xf32>
      %c0_14 = arith.constant 0 : index
      %c0_15 = arith.constant 0 : index
      %30 = vector.load %arg5[%c0_14, %c0_15] : memref<4x4xf32, #tpu.memory_space<vmem>>, vector<4x4xf32>
      tpu.vector_store %arg5[%c0_14, %c0_15], %29 {strides = array<i32>} : memref<4x4xf32, #tpu.memory_space<vmem>>, vector<4x4xf32>,
    } else {
    }
    %c256_i32 = arith.constant 256 : i32
    %3 = arith.muli %arg1, %c256_i32 : i32
    %4 = tpu.assume_multiple %3, 128 : i32
    %c0 = arith.constant 0 : index
    %c0_1 = arith.constant 0 : index
    %5 = arith.index_cast %4 : i32 to index
    %6 = vector.load %arg3[%c0, %c0_1, %5] : memref<1x4x256xf32, #tpu.memory_space<vmem>>, vector<1x4x256xf32>
    %7 = vector.shape_cast %6 : vector<1x4x256xf32> to vector<4x256xf32>
    %c0_2 = arith.constant 0 : index
    %c0_3 = arith.constant 0 : index
    %8 = vector.load %arg5[%c0_2, %c0_3] : memref<4x4xf32, #tpu.memory_space<vmem>>, vector<4x4xf32>
    %cst = arith.constant dense<0.000000e+00> : vector<4x256xf32>
    %9 = tpu.matmul %8, %7, %cst {dimension_numbers = #tpu.dot_dimension_numbers<[1], [0], [0], [1], [0, 0, 1, 1], [], []>} : vector<4x4xf32>, vector<4x256xf32>, vector<4x256xf32> -> vector<4x256xf32>
    %c0_4 = arith.constant 0 : index
    %10 = memref.load %arg2[%c0_4] : memref<1xf32, #tpu.memory_space<smem>>
    %11 = vector.broadcast %10 : f32 to vector<4x256xf32>
    %12 = arith.mulf %11, %9 : vector<4x256xf32>
    %13 = arith.addf %12, %7 : vector<4x256xf32>
    %c0_5 = arith.constant 0 : index
    %c0_6 = arith.constant 0 : index
    %c0_7 = arith.constant 0 : index
    %14 = vector.load %arg4[%c0_5, %c0_6, %c0_7] : memref<1x4x256xf32, #tpu.memory_space<vmem>>, vector<1x4x256xf32>
    %15 = vector.shape_cast %14 : vector<1x4x256xf32> to vector<4x256xf32>
    %16 = vector.shape_cast %13 : vector<4x256xf32> to vector<1x4x256xf32>
    tpu.vector_store %arg4[%c0_5, %c0_6, %c0_7], %16 {strides = array<i32>} : memref<1x4x256xf32, #tpu.memory_space<vmem>>, vector<1x4x256xf32>,
    return
  }
  func.func @transform_0(%arg0: i32, %arg1: i32) -> i32 {
    %c0_i32 = arith.constant 0 : i32
    %c0_i32_0 = arith.constant 0 : i32
    return %c0_i32 : i32
  }
  func.func @transform_1(%arg0: i32, %arg1: i32) -> (i32, i32, i32) {
    %c0_i32 = arith.constant 0 : i32
    %c0_i32_0 = arith.constant 0 : i32
    %c0_i32_1 = arith.constant 0 : i32
    return %arg0, %c0_i32, %c0_i32_0 : i32, i32, i32
  }
  func.func @transform_2(%arg0: i32, %arg1: i32) -> (i32, i32, i32) {
    %c0_i32 = arith.constant 0 : i32
    %c0_i32_0 = arith.constant 0 : i32
    return %arg0, %c0_i32, %arg1 : i32, i32, i32
  }
}

</mosaic_0001>

<llo_original>
// kernel: tpu_custom_call.1
$region0: #{tpu_custom_call.1}
  #allocation0 [shape = 'u32[]', space=smem, size = 0x4, offset = 0x4, fixed_abs, tag = 'smem constant byte address 0x4 - core index']
  #allocation1 [shape = 'u32[144,128]{1,0:T(1,128)}', space=vmem, size = 0x12000, scoped, tag = 'internal scratch']
  #allocation2 [shape = 'f32[4,4]{1,0:T(4,128)}', space=vmem, size = 0x800, scoped, tag = 'scratch operand']
  #allocation3 [shape = 'f32[1]{0:T(128)S(6)}', space=smem, size = 0x200, scoped, tag = 'scoped memory for tpu_custom_call.1']
  %s0 = inlined_call_operand.<no memory space> [shape: f32[1], index: 0, kind: input, shape index: {}]
  %s1 = inlined_call_operand.hbm [shape: f32[2,4,256], index: 1, kind: input, shape index: {}]
  %s2 = inlined_call_operand.hbm [shape: f32[2,4,256], index: 2, kind: output, shape index: {}]
  %s3 = sld [smem:[#allocation0]]
  $region49: #{tpu_custom_call.1} parent=0
    _
  %s5 = ssub.s32 1, %s3
  %s6 = scalar_select 0, %s5, %s3
  %7 = sst [smem:[#allocation3]] %s0
  $region1: #{tpu_custom_call.1} parent=0
    #allocation4 [shape = 'u8[8192]{0}', space=vmem, size = 0x2000, scoped, tag = 'input window, operand 1']
    #allocation5 [shape = 's32[2]{0}', space=sflag, size = 0x8, scoped, tag = 'scoped memory for tpu_custom_call.1']
    #allocation6 [shape = 's32[2]{0}', space=sflag, size = 0x8, scoped, tag = 'scoped memory for tpu_custom_call.1']
    #allocation7 [shape = 'u8[8192]{0}', space=vmem, size = 0x2000, scoped, tag = 'output window, operand 0']
    %8 = vsyncpa [#allocation5], 0
    %s9 = scalar_lea.sflag [#allocation5], 1
    %10 = vsyncpa %s9, 0
    %11 = vsyncpa [#allocation6], 0
    %s12 = scalar_lea.sflag [#allocation6], 1
    %13 = vsyncpa %s12, 0
    loop: start=0, step=1, limit=4
    $region2: #{tpu_custom_call.1} parent=1 // loop_pre_header
      _
    $region3: #{tpu_custom_call.1} parent=1 // loop_header
      %s15 = sphi 0, %s19
      %p16 = scmp.ge.s32.totalorder %s15, 4
      %s22 = sphi 0, %s34
      %s23 = sphi 0, %s30
      %s24 = sphi 0, %s22
      %s25 = sphi 0, %s23
      %s26 = sphi 0, %s24
      %s27 = sphi 0, %s25
      %s35 = sphi 0, %s35
      %s37 = sphi 0, %s35
      %s38 = sphi 0, %s37
      %s52 = sphi 0, %s38
      %s58 = sphi 0, %s60
      %s61 = sphi 0, %s58
      %s62 = sphi 0, %s61
      %s78 = sphi 0, %s62
      %s86 = sphi 0, %s88
      %s89 = sphi 0, %s86
      %s90 = sphi 0, %s89
      %s106 = sphi 0, %s90
    $region4: #{tpu_custom_call.1} parent=1 // loop_header_branch
      %18 = sbr.rel (%p16) target = $region8
    $region5: #{tpu_custom_call.1} parent=1 // loop_body
      %s20 = ssub.s32 %s15, 1
      %s21 = ssub.s32 %s15, 2
      %s28 = sadd.s32 1, %s23
      %p29 = scmp.ge.s32.totalorder %s28, 1
      %s30 = scalar_select %p29, 0, %s28
      %s31 = sadd.s32 1, %s22
      %s32 = scalar_select %p29, %s31, %s22
      %p33 = scmp.ge.s32.totalorder %s32, 2
      %s34 = scalar_select %p33, 0, %s32
      %s36 = sadd.s32 %s35, 1
      %p39 = scmp.eq.s32.totalorder %s15, 1
      %p40 = scmp.ne.s32.totalorder %s35, %s37
      %p41 = scmp.eq.s32.totalorder %s15, 0
      %p42 = por %p40, %p41
      %p43 = scmp.ne.s32.totalorder %s35, %s37
      %p44 = scmp.eq.s32.totalorder %s20, 1
      %p45 = por %p43, %p44
      %p46 = scmp.ne.s32.totalorder %s37, %s38
      %p47 = scmp.eq.s32.totalorder %s20, 0
      %p48 = por %p46, %p47
      %p49 = scmp.ne.s32.totalorder %s37, %s38
      %p50 = scmp.eq.s32.totalorder %s21, 1
      %p51 = por %p49, %p50
      %p53 = scmp.ne.s32.totalorder %s38, %s52
      %p54 = scmp.eq.s32.totalorder %s21, 0
      %p55 = por %p53, %p54
      %s56 = ssub.s32 %s22, %s34
      %p57 = scmp.eq.s32.totalorder %s56, 0
      %s59 = sadd.s32 %s58, 1
      %s60 = scalar_select %p57, %s58, %s59
      %p63 = pneg %p57
      %p64 = scmp.eq.s32.totalorder %s15, 1
      %p65 = por %p63, %p64
      %p66 = scmp.ne.s32.totalorder %s58, %s61
      %p67 = scmp.eq.s32.totalorder %s15, 0
      %p68 = por %p66, %p67
      %p69 = scmp.ne.s32.totalorder %s58, %s61
      %p70 = scmp.eq.s32.totalorder %s20, 1
      %p71 = por %p69, %p70
      %p72 = scmp.ne.s32.totalorder %s61, %s62
      %p73 = scmp.eq.s32.totalorder %s20, 0
      %p74 = por %p72, %p73
      %p75 = scmp.ne.s32.totalorder %s61, %s62
      %p76 = scmp.eq.s32.totalorder %s21, 1
      %p77 = por %p75, %p76
      %p79 = scmp.ne.s32.totalorder %s62, %s78
      %p80 = scmp.eq.s32.totalorder %s21, 0
      %p81 = por %p79, %p80
      %s82 = ssub.s32 %s22, %s34
      %s83 = ssub.s32 %s23, %s30
      %s84 = sor.u32 %s82, %s83
      %p85 = scmp.eq.s32.totalorder %s84, 0
      %s87 = sadd.s32 %s86, 1
      %s88 = scalar_select %p85, %s86, %s87
      %p91 = pneg %p85
      %p92 = scmp.eq.s32.totalorder %s15, 1
      %p93 = por %p91, %p92
      %p94 = scmp.ne.s32.totalorder %s86, %s89
      %p95 = scmp.eq.s32.totalorder %s15, 0
      %p96 = por %p94, %p95
      %p97 = scmp.ne.s32.totalorder %s86, %s89
      %p98 = scmp.eq.s32.totalorder %s20, 1
      %p99 = por %p97, %p98
      %p100 = scmp.ne.s32.totalorder %s89, %s90
      %p101 = scmp.eq.s32.totalorder %s20, 0
      %p102 = por %p100, %p101
      %p103 = scmp.ne.s32.totalorder %s89, %s90
      %p104 = scmp.eq.s32.totalorder %s21, 1
      %p105 = por %p103, %p104
      %p107 = scmp.ne.s32.totalorder %s90, %s106
      %p108 = scmp.eq.s32.totalorder %s21, 0
      %p109 = por %p107, %p108
      %p110 = scmp.le.s32.totalorder 1, %s15
      %p111 = scmp.lt.s32.totalorder %s15, 3
      %p112 = pnand %p110, %p111
      %p113 = pneg %p112
      // Predicated region
      $region9: #{tpu_custom_call.1} parent=5 // pred_check
        _
      $region10: #{tpu_custom_call.1} parent=5 // pred_check_branch
        %115 = sbr.rel (%p112) target = $region12
      $region11: #{tpu_custom_call.1} parent=5 // pred_region
        %s116 = ssub.s32 %s15, 1
        // Predicated region
        $region13: #{tpu_custom_call.1} parent=11 // pred_check
          %p117 = pneg %p48
        $region14: #{tpu_custom_call.1} parent=11 // pred_check_branch
          %119 = sbr.rel (%p117) target = $region16
        $region15: #{tpu_custom_call.1} parent=11 // pred_region
          _
        $region16: #{tpu_custom_call.1} parent=11 // pred_fallthru
          _
      $region12: #{tpu_custom_call.1} parent=5 // pred_fallthru
        _
      %p120 = scmp.lt.s32.totalorder %s15, 2
      // Predicated region
      $region17: #{tpu_custom_call.1} parent=5 // pred_check
        %p121 = pneg %p120
      $region18: #{tpu_custom_call.1} parent=5 // pred_check_branch
        %123 = sbr.rel (%p121) target = $region20
      $region19: #{tpu_custom_call.1} parent=5 // pred_region
        // Predicated region
        $region21: #{tpu_custom_call.1} parent=19 // pred_check
          %p124 = pneg %p68
        $region22: #{tpu_custom_call.1} parent=19 // pred_check_branch
          %126 = sbr.rel (%p124) target = $region24
        $region23: #{tpu_custom_call.1} parent=19 // pred_region
          %s127 = sand.u32 %s58, 1
          %s128 = scalar_lea.sflag [#allocation5], %s127
          %s129 = sand.u32 %s58, 1
          %s130 = smul.addr %s129, 8
          %s131 = scalar_lea.vmem [#allocation4], %s130
          %s133 = ssub.s32 128, 128
          %134 = vsyncadd %s128, %s133
          %s135 = smul.addr %s22, 2
          %s136 = smul.addr %s135, 64
          %s137 = scalar_lea.hbm %s1, %s136
          %s139 = sshll.u32 %s131, 4
          %s140 = int_to_ptr.vmem [resolvable:$true] %s139
          %142 = dma.hbm_to_vmem [thread:$0]  %s137, 128, %s140, %s128
        $region24: #{tpu_custom_call.1} parent=19 // pred_fallthru
          _
      $region20: #{tpu_custom_call.1} parent=5 // pred_fallthru
        _
      %p143 = scmp.le.s32.totalorder 1, %s15
      %p144 = scmp.lt.s32.totalorder %s15, 3
      %p145 = pnand %p143, %p144
      %p146 = pneg %p145
      // Predicated region
      $region25: #{tpu_custom_call.1} parent=5 // pred_check
        _
      $region26: #{tpu_custom_call.1} parent=5 // pred_check_branch
        %148 = sbr.rel (%p145) target = $region28
      $region27: #{tpu_custom_call.1} parent=5 // pred_region
        %s149 = ssub.s32 %s15, 1
        %s150 = sand.u32 %s61, 1
        %s151 = scalar_lea.sflag [#allocation5], %s150
        %s152 = sand.u32 %s61, 1
        %s153 = smul.addr %s152, 8
        %s154 = scalar_lea.vmem [#allocation4], %s153
        // Predicated region
        $region29: #{tpu_custom_call.1} parent=27 // pred_check
          %p155 = pneg %p74
        $region30: #{tpu_custom_call.1} parent=27 // pred_check_branch
          %157 = sbr.rel (%p155) target = $region32
        $region31: #{tpu_custom_call.1} parent=27 // pred_region
          %158 = dma.done %s151, 128
        $region32: #{tpu_custom_call.1} parent=27 // pred_fallthru
          _
        %p159 = pneg %p48
        %p160 = pneg %p45
        %s161 = sand.u32 %s61, 1
        %s162 = scalar_lea.sflag [#allocation5], %s161
        %s163 = sand.u32 %s61, 1
        %s164 = smul.addr %s163, 8
        %s165 = scalar_lea.vmem [#allocation4], %s164
        %p166 = pneg %p74
        %p167 = pneg %p71
        %p168 = pneg %p102
        %p169 = pneg %p99
        %s170 = sand.u32 %s89, 1
        %s171 = scalar_lea.sflag [#allocation6], %s170
        %s172 = sand.u32 %s89, 1
        %s173 = smul.addr %s172, 8
        %s174 = scalar_lea.vmem [#allocation7], %s173
        %s175 = smul.u32 2, %s25
        %p176 = scmp.eq.s32.totalorder %s25, 0
        // Predicated region
        $region33: #{tpu_custom_call.1} parent=27 // pred_check
          %p177 = pneg %p176
        $region34: #{tpu_custom_call.1} parent=27 // pred_check_branch
          %179 = sbr.rel (%p177) target = $region36
        $region35: #{tpu_custom_call.1} parent=27 // pred_region
          %v180 = vld [vmem:[%s154] sm:$0xff]
          %v182 = vcombine.high %v180, %v180
          %184 = vmatprep.subr.mxu0 0.0
          %185 = vmatpush1.xpose.msra.mxu0 0.0
          %186 = vmatprep.subr.mxu0 0.0
          %187 = vmatpush1.xpose.msra.mxu0 0.0
          %188 = vmatprep.subr.mxu0 0.0
          %189 = vmatpush1.xpose.msra.mxu0 0.0
          %190 = vmatprep.subr.mxu0 0.0
          %191 = vmatpush1.xpose.msra.mxu0 0.0
          %192 = vmatprep.subr.mxu0 0.0
          %193 = vmatpush1.xpose.msra.mxu0 0.0
          %194 = vmatprep.subr.mxu0 0.0
          %195 = vmatpush1.xpose.msra.mxu0 0.0
          %196 = vmatprep.subr.mxu0 0.0
          %197 = vmatpush1.xpose.msra.mxu0 0.0
          %198 = vmatprep.subr.mxu0 0.0
          %199 = vmatpush1.xpose.msra.mxu0 0.0
          %200 = vmatprep.subr.mxu0 0.0
          %201 = vmatpush1.xpose.msra.mxu0 0.0
          %202 = vmatprep.subr.mxu0 0.0
          %203 = vmatpush1.xpose.msra.mxu0 0.0
          %204 = vmatprep.subr.mxu0 0.0
          %205 = vmatpush1.xpose.msra.mxu0 0.0
          %206 = vmatprep.subr.mxu0 0.0
          %207 = vmatpush1.xpose.msra.mxu0 0.0
          %208 = vmatprep.subr.mxu0 0.0
          %209 = vmatpush1.xpose.msra.mxu0 0.0
          %210 = vmatprep.subr.mxu0 0.0
          %211 = vmatpush1.xpose.msra.mxu0 0.0
          %212 = vmatprep.subr.mxu0 0.0
          %213 = vmatpush1.xpose.msra.mxu0 0.0
          %214 = vmatprep.subr.mxu0 %v182
          %215 = vmatpush1.xpose.msra.mxu0 %v180
          %216 = vmatprep.subr.mxu0 0.0
          %217 = vmatpush2.xpose.msra.mxu0 0.0
          %218 = vmatprep.subr.mxu0 0.0
          %219 = vmatpush2.xpose.msra.mxu0 0.0
          %220 = vmatprep.subr.mxu0 0.0
          %221 = vmatpush2.xpose.msra.mxu0 0.0
          %222 = vmatprep.subr.mxu0 0.0
          %223 = vmatpush2.xpose.msra.mxu0 0.0
          %224 = vmatprep.subr.mxu0 0.0
          %225 = vmatpush2.xpose.msra.mxu0 0.0
          %226 = vmatprep.subr.mxu0 0.0
          %227 = vmatpush2.xpose.msra.mxu0 0.0
          %228 = vmatprep.subr.mxu0 0.0
          %229 = vmatpush2.xpose.msra.mxu0 0.0
          %230 = vmatprep.subr.mxu0 0.0
          %231 = vmatpush2.xpose.msra.mxu0 0.0
          %232 = vmatprep.subr.mxu0 0.0
          %233 = vmatpush2.xpose.msra.mxu0 0.0
          %234 = vmatprep.subr.mxu0 0.0
          %235 = vmatpush2.xpose.msra.mxu0 0.0
          %236 = vmatprep.subr.mxu0 0.0
          %237 = vmatpush2.xpose.msra.mxu0 0.0
          %238 = vmatprep.subr.mxu0 0.0
          %239 = vmatpush2.xpose.msra.mxu0 0.0
          %240 = vmatprep.subr.mxu0 0.0
          %241 = vmatpush2.xpose.msra.mxu0 0.0
          %242 = vmatprep.subr.mxu0 0.0
          %243 = vmatpush2.xpose.msra.mxu0 0.0
          %244 = vmatprep.subr.mxu0 0.0
          %245 = vmatpush2.xpose.msra.mxu0 0.0
          %246 = vmatprep.subr.mxu0 0.0
          %247 = vmatpush2.xpose.msra.mxu0 0.0
          %248 = vmatprep.mubr.f32.mxu0 %v182
          %249 = vmatmul.mubr.f32.gmra.mxu0 %v180
          %v250 = vpop.f32.mrf.mxu0
          %v251 = vadd.f32 0.0, %v250
          %v252 = vpop.f32.mrf.mxu0
          %253 = vdwg.mxu0
          %vm254 = vcmask 27648
          %v255 = vsel %vm254, %v251, inf
          %256 = vmin.xlane.f32.xlu0 %v255
          %v257 = vpop.xlane.xlu0 %256
          %v258 = vsub.f32 %v257, %v251
          %v259 = vmul.f32 %v258, 1.442695
          %v260 = vpow.pop %v259
          %v261 = vsel %vm254, %v260, 0.0
          %262 = vadd.xlane.f32.xlu0 %v261
          %v263 = vpop.xlane.xlu0 %262
          %v264 = vrcp.pop %v263
          %v265 = vmul.f32 %v260, %v264
          %266 = vst.msk [vmem:[#allocation2] sm:$0xf] %vm254, %v265
        $region36: #{tpu_custom_call.1} parent=27 // pred_fallthru
          _
        %s267 = smul.u32 %s25, 256
        %s268 = sshra.s32 %s267, 7
        %s269 = sand.u32 %s267, 127
        %s270 = smul.addr %s268, 4
        %s271 = scalar_lea.vmem %s154, %s270 [#allocation4]
        %v272 = vld [vmem:[%s271] sm:$0xff]
        %v273 = vld [vmem:[#allocation2] sm:$0xf]
        %v275 = vcombine.high %v272, %v272
        %vm276 = vcmask 31744
        %v278 = vsel %vm276, %v273, 0
        %vm280 = vcmask 1043456
        %v281 = vsel %vm280, %v272, 0
        %v283 = vsel %vm280, %v275, 0
        %285 = vmatprep.subr.mxu0 0.0
        %286 = vmatpush1.msra.mxu0 0.0
        %287 = vmatprep.subr.mxu0 0.0
        %288 = vmatpush1.msra.mxu0 0.0
        %289 = vmatprep.subr.mxu0 0.0
        %290 = vmatpush1.msra.mxu0 0.0
        %291 = vmatprep.subr.mxu0 0.0
        %292 = vmatpush1.msra.mxu0 0.0
        %293 = vmatprep.subr.mxu0 0.0
        %294 = vmatpush1.msra.mxu0 0.0
        %295 = vmatprep.subr.mxu0 0.0
        %296 = vmatpush1.msra.mxu0 0.0
        %297 = vmatprep.subr.mxu0 0.0
        %298 = vmatpush1.msra.mxu0 0.0
        %299 = vmatprep.subr.mxu0 0.0
        %300 = vmatpush1.msra.mxu0 0.0
        %301 = vmatprep.subr.mxu0 0.0
        %302 = vmatpush1.msra.mxu0 0.0
        %303 = vmatprep.subr.mxu0 0.0
        %304 = vmatpush1.msra.mxu0 0.0
        %305 = vmatprep.subr.mxu0 0.0
        %306 = vmatpush1.msra.mxu0 0.0
        %307 = vmatprep.subr.mxu0 0.0
        %308 = vmatpush1.msra.mxu0 0.0
        %309 = vmatprep.subr.mxu0 0.0
        %310 = vmatpush1.msra.mxu0 0.0
        %311 = vmatprep.subr.mxu0 0.0
        %312 = vmatpush1.msra.mxu0 0.0
        %313 = vmatprep.subr.mxu0 0.0
        %314 = vmatpush1.msra.mxu0 0.0
        %315 = vmatprep.subr.mxu0 %v283
        %316 = vmatpush1.msra.mxu0 %v281
        %317 = vmatprep.subr.mxu0 0.0
        %318 = vmatpush2.msra.mxu0 0.0
        %319 = vmatprep.subr.mxu0 0.0
        %320 = vmatpush2.msra.mxu0 0.0
        %321 = vmatprep.subr.mxu0 0.0
        %322 = vmatpush2.msra.mxu0 0.0
        %323 = vmatprep.subr.mxu0 0.0
        %324 = vmatpush2.msra.mxu0 0.0
        %325 = vmatprep.subr.mxu0 0.0
        %326 = vmatpush2.msra.mxu0 0.0
        %327 = vmatprep.subr.mxu0 0.0
        %328 = vmatpush2.msra.mxu0 0.0
        %329 = vmatprep.subr.mxu0 0.0
        %330 = vmatpush2.msra.mxu0 0.0
        %331 = vmatprep.subr.mxu0 0.0
        %332 = vmatpush2.msra.mxu0 0.0
        %333 = vmatprep.subr.mxu0 0.0
        %334 = vmatpush2.msra.mxu0 0.0
        %335 = vmatprep.subr.mxu0 0.0
        %336 = vmatpush2.msra.mxu0 0.0
        %337 = vmatprep.subr.mxu0 0.0
        %338 = vmatpush2.msra.mxu0 0.0
        %339 = vmatprep.subr.mxu0 0.0
        %340 = vmatpush2.msra.mxu0 0.0
        %341 = vmatprep.subr.mxu0 0.0
        %342 = vmatpush2.msra.mxu0 0.0
        %343 = vmatprep.subr.mxu0 0.0
        %344 = vmatpush2.msra.mxu0 0.0
        %345 = vmatprep.subr.mxu0 0.0
        %346 = vmatpush2.msra.mxu0 0.0
        %347 = vmatprep.subr.mxu0 0.0
        %348 = vmatpush2.msra.mxu0 0.0
        %349 = vmatprep.mubr.f32.mxu0 0.0
        %350 = vmatmul.mubr.f32.gmra.mxu0 %v278
        %v351 = vpop.f32.mrf.mxu0
        %v352 = vadd.f32 0.0, %v351
        %v353 = vpop.f32.mrf.mxu0
        %v354 = vadd.f32 0.0, %v353
        %355 = vdwg.mxu0
        %s356 = sld [smem:[#allocation3]]
        %v357 = vstv %s356
        %v358 = vmul.f32 %v357, %v352
        %v359 = vmul.f32 %v357, %v354
        %v361 = vadd.f32 %v358, %v272
        %v362 = vadd.f32 %v359, %v275
        %v365 = vcombine.low %v361, %v362
        %367 = vst [vmem:[%s174] sm:$0xff] %v365
        %s368 = sand.u32 %s89, 1
        %s369 = scalar_lea.sflag [#allocation6], %s368
        %s370 = sand.u32 %s89, 1
        %s371 = smul.addr %s370, 8
        %s372 = scalar_lea.vmem [#allocation7], %s371
        // Predicated region
        $region37: #{tpu_custom_call.1} parent=27 // pred_check
          %p373 = pneg %p99
        $region38: #{tpu_custom_call.1} parent=27 // pred_check_branch
          %375 = sbr.rel (%p373) target = $region40
        $region39: #{tpu_custom_call.1} parent=27 // pred_region
          %s376 = smul.u32 2, %s25
          %s378 = ssub.s32 128, 128
          %379 = vsyncadd %s369, %s378
          %s380 = smul.addr %s24, 2
          %s381 = sadd.s32 %s376, %s380
          %s382 = smul.addr %s381, 64
          %s383 = scalar_lea.hbm %s2, %s382
          %s385 = sshll.u32 %s372, 4
          %s386 = int_to_ptr.vmem [resolvable:$true] %s385
          %388 = dma.vmem_to_hbm [thread:$0]  %s386, 128, %s383, %s369
        $region40: #{tpu_custom_call.1} parent=27 // pred_fallthru
          _
      $region28: #{tpu_custom_call.1} parent=5 // pred_fallthru
        _
      %p389 = scmp.le.s32.totalorder 2, %s15
      // Predicated region
      $region41: #{tpu_custom_call.1} parent=5 // pred_check
        %p390 = pneg %p389
      $region42: #{tpu_custom_call.1} parent=5 // pred_check_branch
        %392 = sbr.rel (%p390) target = $region44
      $region43: #{tpu_custom_call.1} parent=5 // pred_region
        %s393 = ssub.s32 %s15, 2
        // Predicated region
        $region45: #{tpu_custom_call.1} parent=43 // pred_check
          %p394 = pneg %p105
        $region46: #{tpu_custom_call.1} parent=43 // pred_check_branch
          %396 = sbr.rel (%p394) target = $region48
        $region47: #{tpu_custom_call.1} parent=43 // pred_region
          %s397 = sand.u32 %s90, 1
          %s398 = scalar_lea.sflag [#allocation6], %s397
          %s399 = sand.u32 %s90, 1
          %s400 = smul.addr %s399, 8
          %s401 = scalar_lea.vmem [#allocation7], %s400
          %402 = dma.done %s398, 128
        $region48: #{tpu_custom_call.1} parent=43 // pred_fallthru
          _
      $region44: #{tpu_custom_call.1} parent=5 // pred_fallthru
        _
    $region6: #{tpu_custom_call.1} parent=1 // loop_footer
      %s19 = sadd.s32 1, %s15
    $region7: #{tpu_custom_call.1} parent=1 // loop_footer_branch
      %14 = sbr.rel target = $region3
    $region8: #{tpu_custom_call.1} parent=1 // loop_exit
      _
    %403 = vsyncpa [#allocation5], 1
    %s404 = scalar_lea.sflag [#allocation5], 1
    %405 = vsyncpa %s404, 1
    %406 = vsyncpa [#allocation6], 1
    %s407 = scalar_lea.sflag [#allocation6], 1
    %408 = vsyncpa %s407, 1

</llo_original>
